<compile_context>
chip_gen: v5e
topology: v5e:2x2
jax: 0.10.0
libtpu: 0.0.40
codegen_flags: <defaults>
</compile_context>

<pallas_src>
import math

import jax
import jax.numpy as jnp
from jax.experimental import pallas as pl
from jax.experimental.pallas import tpu as pltpu


def data_embedding_kernel(x_ref, w_ref, pe_ref, o_ref):
    """One grid step: bb full sequences -> circular conv1d(k=3) + pos. emb.

    x_ref : (bb, L, c_in)    input block, original dtype (cast in-kernel)
    w_ref : (3, c_in, d_pad) conv taps; k=0 -> x[t-1], k=1 -> x[t], k=2 -> x[t+1]
    pe_ref: (L, d_pad)       positional embedding, float32
    o_ref : (bb, L, d_pad)   output block
    """
    bb = x_ref.shape[0]

    # Single HBM->VMEM read of x; cast once to the MXU operand dtype.
    x = x_ref[...].astype(w_ref.dtype)
    # Circular taps built in-kernel: the block spans the full sequence axis,
    # so a roll along axis 1 is exactly PyTorch's circular padding.
    xm1 = jnp.roll(x, 1, axis=1)    # x[t-1]
    xp1 = jnp.roll(x, -1, axis=1)   # x[t+1]

    w0 = w_ref[0]
    w1 = w_ref[1]
    w2 = w_ref[2]
    pe = pe_ref[...]                # float32

    # Per-sequence 2-D matmuls (statically unrolled; bb is small and capped).
    # This avoids any reshape of the (bb, L, d_pad) f32 result, so no
    # (8,128)-tile-crossing VMEM copy when L % 8 != 0.
    for b in range(bb):
        y = jnp.dot(x[b], w1, preferred_element_type=jnp.float32)
        y += jnp.dot(xm1[b], w0, preferred_element_type=jnp.float32)
        y += jnp.dot(xp1[b], w2, preferred_element_type=jnp.float32)
        o_ref[b] = (y + pe).astype(o_ref.dtype)   # PE add stays in f32


def make_positional_embedding(seq_len, d_model, dtype=jnp.float32):
    position = jnp.arange(seq_len, dtype=jnp.float32)[:, None]             # (L, 1)
    div_term = jnp.exp(
        jnp.arange(0, d_model, 2, dtype=jnp.float32)
        * -(math.log(10000.0) / d_model)
    )                                                                       # (ceil(d/2),)
    pe = jnp.zeros((seq_len, d_model), dtype=jnp.float32)
    pe = pe.at[:, 0::2].set(jnp.sin(position * div_term))
    pe = pe.at[:, 1::2].set(jnp.cos(position * div_term)[:, : d_model // 2])
    return pe.astype(dtype)


def _choose_block_batch(B, L, c_in, d_pad, x_bytes, w_bytes, out_bytes):
    """How many batch elements per grid step (always a divisor of B)."""
    # Conservative per-step VMEM accounting:
    per_b = (
        2 * L * c_in * x_bytes        # x block, double-buffered
        + 3 * L * c_in * w_bytes      # in-kernel cast + two rolled tap copies
        + 2 * L * d_pad * out_bytes   # output block, double-buffered
        + L * d_pad * 4               # f32 accumulator (worst-case live range)
    )
    fixed = 2 * (3 * c_in * d_pad * w_bytes) + 2 * (L * d_pad * 4)  # weight + PE
    budget = 24 * 1024 * 1024         # stays well under v7x's 64 MiB physical
    cap = max(1, (budget - fixed) // max(per_b, 1))
    cap = min(cap, 32)                # bound the static unroll of the kernel loop
    # Keep >= min(B, 4) grid steps: 2 per TensorCore on v7x's megacore, and
    # prefetch/writeback overlap on single-core v5e/v6e (don't shrink further).
    cap = min(cap, max(1, B // min(B, 4)))
    cap = min(cap, B)
    bb = 1
    for d in range(1, int(cap) + 1):  # largest divisor of B under the cap
        if B % d == 0:
            bb = d
    return bb


def data_embedding(x, conv_weight, *, compute_dtype=jnp.bfloat16, out_dtype=None,
                   block_batch=None):
    """DataEmbedding.forward (dropout p=0) as a Pallas TPU kernel.

    x            : (B, L, c_in)
    conv_weight  : (d_model, c_in, 3)   PyTorch Conv1d weight layout
    compute_dtype: MXU operand dtype (bf16 default; pass jnp.float32 for exact)
    out_dtype    : output dtype (default: x.dtype); bf16 halves the HBM write
    """
    B, L, c_in = x.shape
    d_model = conv_weight.shape[0]
    if out_dtype is None:
        out_dtype = x.dtype
    if compute_dtype is None:
        compute_dtype = x.dtype

    # Lane-dense output: pad d_model up to a multiple of 128 (zeros in weight
    # columns + PE), slice off after the call. No-op for d_model % 128 == 0.
    d_pad = ((d_model + 127) // 128) * 128

    # PyTorch conv1d (circular, padding=1):
    #   out[o, t] = sum_{i,k} w[o, i, k] * x[(t - 1 + k) mod L, i]
    # -> tap k=0 pairs with x[t-1], k=1 with x[t], k=2 with x[t+1].
    w = jnp.transpose(conv_weight, (2, 1, 0)).astype(compute_dtype)  # (3, c_in, d_model)
    if d_pad != d_model:
        w = jnp.pad(w, ((0, 0), (0, 0), (0, d_pad - d_model)))

    pe = make_positional_embedding(L, d_model, jnp.float32)          # keep PE in f32
    if d_pad != d_model:
        pe = jnp.pad(pe, ((0, 0), (0, d_pad - d_model)))

    x_bytes = jnp.dtype(x.dtype).itemsize
    w_bytes = jnp.dtype(compute_dtype).itemsize
    o_bytes = jnp.dtype(out_dtype).itemsize
    bb = block_batch if (block_batch and B % block_batch == 0) else None
    if bb is None:
        bb = _choose_block_batch(B, L, c_in, d_pad, x_bytes, w_bytes, o_bytes)
    grid = B // bb                                                    # exact, no padding

    out = pl.pallas_call(
        data_embedding_kernel,
        out_shape=jax.ShapeDtypeStruct((B, L, d_pad), out_dtype),
        grid_spec=pltpu.PrefetchScalarGridSpec(
            num_scalar_prefetch=0,
            grid=(grid,),
            in_specs=[
                pl.BlockSpec((bb, L, c_in), lambda i: (i, 0, 0)),
                # Constant index maps -> weight / PE stay VMEM-resident.
                pl.BlockSpec((3, c_in, d_pad), lambda i: (0, 0, 0)),
                pl.BlockSpec((L, d_pad), lambda i: (0, 0)),
            ],
            out_specs=pl.BlockSpec((bb, L, d_pad), lambda i: (i, 0, 0)),
        ),
        compiler_params=pltpu.CompilerParams(
            dimension_semantics=("parallel",),
            # Blocks are budgeted to ~24 MiB; 48 MiB scoped limit leaves
            # headroom and is valid on v5e/v6e (128 MiB) and v7x (64 MiB).
            vmem_limit_bytes=48 * 1024 * 1024,
        ),
    )(x, w, pe)

    if d_pad != d_model:
        out = out[..., :d_model]
    return out


def reference(x, conv_weight):
    """Pure-JAX reference of the same forward pass (for sanity checking)."""
    B, L, c_in = x.shape
    d_model = conv_weight.shape[0]
    w = jnp.transpose(conv_weight, (2, 1, 0))      # (3, c_in, d_model)
    x_prev = jnp.roll(x, 1, axis=1)
    x_next = jnp.roll(x, -1, axis=1)
    y = (jnp.einsum("blc,cd->bld", x_prev, w[0])
         + jnp.einsum("blc,cd->bld", x, w[1])
         + jnp.einsum("blc,cd->bld", x_next, w[2]))
    return y + make_positional_embedding(L, d_model)[None]


if __name__ == "__main__":
    # Small shapes consistent with DataEmbedding: x is (batch, seq_len, c_in).
    B, L, c_in, d_model = 2, 16, 4, 32

    key = jax.random.PRNGKey(0)
    kx, kw = jax.random.split(key)

    x = jax.random.normal(kx, (B, L, c_in), dtype=jnp.float32)

    # Deterministic Kaiming-normal-like init (fan_in = c_in * kernel_size),
    # PyTorch weight layout (d_model, c_in, 3).
    fan_in = c_in * 3
    std = math.sqrt(2.0 / fan_in)
    conv_weight = std * jax.random.normal(kw, (d_model, c_in, 3), dtype=jnp.float32)

    ref = reference(x, conv_weight)

    # Exact f32 path — must match the PyTorch semantics tightly.
    out_f32 = jax.block_until_ready(
        data_embedding(x, conv_weight, compute_dtype=jnp.float32))
    assert out_f32.shape == (B, L, d_model)
    assert out_f32.dtype == x.dtype
    assert jnp.allclose(out_f32, ref, atol=1e-5, rtol=1e-5), "mismatch vs reference (f32)"

    # Default path: bf16 MXU operands, f32 accumulation + f32 PE add, f32 output.
    out_def = jax.block_until_ready(data_embedding(x, conv_weight))
    assert out_def.shape == (B, L, d_model)
    assert jnp.allclose(out_def, ref, atol=5e-2, rtol=5e-2), "mismatch vs reference (bf16 compute)"

    # bf16-output path (halves the dominant HBM write for bf16 consumers).
    out_bf16o = jax.block_until_ready(
        data_embedding(x, conv_weight, out_dtype=jnp.bfloat16))
    assert out_bf16o.shape == (B, L, d_model)
    assert out_bf16o.dtype == jnp.bfloat16
    assert jnp.allclose(out_bf16o.astype(jnp.float32), ref, atol=1e-1, rtol=1e-1), \
        "mismatch vs reference (bf16 out)"

    # NOTE: nn.Dropout has p=0.0 in this module, i.e. identity; p>0 train-mode
    # dropout is intentionally not implemented.
    print("KERNEL_OK")
</pallas_src>

<mosaic_0001>
module attributes {stable_mosaic.version = 11 : i64} {
  func.func @data_embedding_kernel(%arg0: i32, %arg1: memref<1x16x4xf32, #tpu.memory_space<vmem>>, %arg2: memref<3x4x128xf32, #tpu.memory_space<vmem>>, %arg3: memref<16x128xf32, #tpu.memory_space<vmem>>, %arg4: memref<1x16x128xf32, #tpu.memory_space<vmem>>) attributes {dimension_semantics = [#tpu.dimension_semantics<parallel>], iteration_bounds = array<i64: 2>, scalar_prefetch = 0 : i64, scratch_operands = 0 : i64, tpu.core_type = #tpu.core_type<tc>, window_params = [{transform_indices = @transform_0, window_bounds = array<i64: 1, 16, 4>}, {pipeline_mode = #tpu.pipeline_mode<synchronous>, transform_indices = @transform_1, window_bounds = array<i64: 3, 4, 128>}, {pipeline_mode = #tpu.pipeline_mode<synchronous>, transform_indices = @transform_2, window_bounds = array<i64: 16, 128>}, {transform_indices = @transform_3, window_bounds = array<i64: 1, 16, 128>}]} {
    %c0 = arith.constant 0 : index
    %c0_0 = arith.constant 0 : index
    %c0_1 = arith.constant 0 : index
    %0 = vector.load %arg1[%c0, %c0_0, %c0_1] : memref<1x16x4xf32, #tpu.memory_space<vmem>>, vector<1x16x4xf32>
    %1 = vector.extract_strided_slice %0 {offsets = [0, 15, 0], sizes = [1, 1, 4], strides = [1, 1, 1]} : vector<1x16x4xf32> to vector<1x1x4xf32>
    %2 = vector.extract_strided_slice %0 {offsets = [0, 0, 0], sizes = [1, 15, 4], strides = [1, 1, 1]} : vector<1x16x4xf32> to vector<1x15x4xf32>
    %3 = tpu.concatenate %1, %2 in 1 : vector<1x1x4xf32>, vector<1x15x4xf32> -> vector<1x16x4xf32>
    %4 = vector.extract_strided_slice %0 {offsets = [0, 1, 0], sizes = [1, 15, 4], strides = [1, 1, 1]} : vector<1x16x4xf32> to vector<1x15x4xf32>
    %5 = vector.extract_strided_slice %0 {offsets = [0, 0, 0], sizes = [1, 1, 4], strides = [1, 1, 1]} : vector<1x16x4xf32> to vector<1x1x4xf32>
    %6 = tpu.concatenate %4, %5 in 1 : vector<1x15x4xf32>, vector<1x1x4xf32> -> vector<1x16x4xf32>
    %c0_2 = arith.constant 0 : index
    %c0_3 = arith.constant 0 : index
    %c0_4 = arith.constant 0 : index
    %7 = vector.load %arg2[%c0_2, %c0_3, %c0_4] : memref<3x4x128xf32, #tpu.memory_space<vmem>>, vector<1x4x128xf32>
    %8 = vector.shape_cast %7 : vector<1x4x128xf32> to vector<4x128xf32>
    %c1 = arith.constant 1 : index
    %c0_5 = arith.constant 0 : index
    %c0_6 = arith.constant 0 : index
    %9 = vector.load %arg2[%c1, %c0_5, %c0_6] : memref<3x4x128xf32, #tpu.memory_space<vmem>>, vector<1x4x128xf32>
    %10 = vector.shape_cast %9 : vector<1x4x128xf32> to vector<4x128xf32>
    %c2 = arith.constant 2 : index
    %c0_7 = arith.constant 0 : index
    %c0_8 = arith.constant 0 : index
    %11 = vector.load %arg2[%c2, %c0_7, %c0_8] : memref<3x4x128xf32, #tpu.memory_space<vmem>>, vector<1x4x128xf32>
    %12 = vector.shape_cast %11 : vector<1x4x128xf32> to vector<4x128xf32>
    %c0_9 = arith.constant 0 : index
    %c0_10 = arith.constant 0 : index
    %13 = vector.load %arg3[%c0_9, %c0_10] : memref<16x128xf32, #tpu.memory_space<vmem>>, vector<16x128xf32>
    %14 = vector.shape_cast %0 : vector<1x16x4xf32> to vector<16x4xf32>
    %cst = arith.constant dense<0.000000e+00> : vector<16x128xf32>
    %15 = tpu.matmul %14, %10, %cst {dimension_numbers = #tpu.dot_dimension_numbers<[1], [0], [0], [1], [0, 0, 1, 1], [], []>} : vector<16x4xf32>, vector<4x128xf32>, vector<16x128xf32> -> vector<16x128xf32>
    %16 = vector.shape_cast %3 : vector<1x16x4xf32> to vector<16x4xf32>
    %cst_11 = arith.constant dense<0.000000e+00> : vector<16x128xf32>
    %17 = tpu.matmul %16, %8, %cst_11 {dimension_numbers = #tpu.dot_dimension_numbers<[1], [0], [0], [1], [0, 0, 1, 1], [], []>} : vector<16x4xf32>, vector<4x128xf32>, vector<16x128xf32> -> vector<16x128xf32>
    %18 = arith.addf %15, %17 : vector<16x128xf32>
    %19 = vector.shape_cast %6 : vector<1x16x4xf32> to vector<16x4xf32>
    %cst_12 = arith.constant dense<0.000000e+00> : vector<16x128xf32>
    %20 = tpu.matmul %19, %12, %cst_12 {dimension_numbers = #tpu.dot_dimension_numbers<[1], [0], [0], [1], [0, 0, 1, 1], [], []>} : vector<16x4xf32>, vector<4x128xf32>, vector<16x128xf32> -> vector<16x128xf32>
    %21 = arith.addf %18, %20 : vector<16x128xf32>
    %22 = arith.addf %21, %13 : vector<16x128xf32>
    %c0_13 = arith.constant 0 : index
    %c0_14 = arith.constant 0 : index
    %c0_15 = arith.constant 0 : index
    %23 = vector.load %arg4[%c0_13, %c0_14, %c0_15] : memref<1x16x128xf32, #tpu.memory_space<vmem>>, vector<1x16x128xf32>
    %24 = vector.shape_cast %23 : vector<1x16x128xf32> to vector<16x128xf32>
    %25 = vector.shape_cast %22 : vector<16x128xf32> to vector<1x16x128xf32>
    tpu.vector_store %arg4[%c0_13, %c0_14, %c0_15], %25 {strides = array<i32>} : memref<1x16x128xf32, #tpu.memory_space<vmem>>, vector<1x16x128xf32>,
    return
  }
  func.func @transform_0(%arg0: i32) -> (i32, i32, i32) {
    %c0_i32 = arith.constant 0 : i32
    %c0_i32_0 = arith.constant 0 : i32
    %c0_i32_1 = arith.constant 0 : i32
    return %arg0, %c0_i32, %c0_i32_0 : i32, i32, i32
  }
  func.func @transform_1(%arg0: i32) -> (i32, i32, i32) {
    %c0_i32 = arith.constant 0 : i32
    %c0_i32_0 = arith.constant 0 : i32
    %c0_i32_1 = arith.constant 0 : i32
    %c0_i32_2 = arith.constant 0 : i32
    return %c0_i32, %c0_i32_0, %c0_i32_1 : i32, i32, i32
  }
  func.func @transform_2(%arg0: i32) -> (i32, i32) {
    %c0_i32 = arith.constant 0 : i32
    %c0_i32_0 = arith.constant 0 : i32
    %c0_i32_1 = arith.constant 0 : i32
    return %c0_i32, %c0_i32_0 : i32, i32
  }
  func.func @transform_3(%arg0: i32) -> (i32, i32, i32) {
    %c0_i32 = arith.constant 0 : i32
    %c0_i32_0 = arith.constant 0 : i32
    %c0_i32_1 = arith.constant 0 : i32
    return %arg0, %c0_i32, %c0_i32_0 : i32, i32, i32
  }
}

</mosaic_0001>

<llo_original>
// kernel: tpu_custom_call.1
$region0: #{tpu_custom_call.1}
  #allocation0 [shape = 'u32[]', space=smem, size = 0x4, offset = 0x4, fixed_abs, tag = 'smem constant byte address 0x4 - core index']
  #allocation1 [shape = 'u32[72,128]{1,0:T(1,128)}', space=vmem, size = 0x9000, scoped, tag = 'internal scratch']
  %s0 = inlined_call_operand.vmem [shape: f32[2,16,4], index: 0, kind: input, shape index: {}]
  %s1 = inlined_call_operand.vmem [shape: f32[3,4,128], index: 1, kind: input, shape index: {}]
  %s2 = inlined_call_operand.vmem [shape: f32[16,128], index: 2, kind: input, shape index: {}]
  %s3 = inlined_call_operand.hbm [shape: f32[2,16,128], index: 3, kind: output, shape index: {}]
  %s4 = sld [smem:[#allocation0]]
  $region45: #{tpu_custom_call.1} parent=0
    _
  %s6 = ssub.s32 1, %s4
  %s7 = scalar_select 0, %s6, %s4
  $region1: #{tpu_custom_call.1} parent=0
    #allocation2 [shape = 'u8[16384]{0}', space=vmem, size = 0x4000, scoped, tag = 'output window, operand 0']
    #allocation3 [shape = 's32[2]{0}', space=sflag, size = 0x8, scoped, tag = 'scoped memory for tpu_custom_call.1']
    %8 = vsyncpa [#allocation3], 0
    %s9 = scalar_lea.sflag [#allocation3], 1
    %10 = vsyncpa %s9, 0
    loop: start=0, step=1, limit=4
    $region2: #{tpu_custom_call.1} parent=1 // loop_pre_header
      _
    $region3: #{tpu_custom_call.1} parent=1 // loop_header
      %s12 = sphi 0, %s16
      %p13 = scmp.ge.s32.totalorder %s12, 4
      %s22 = sphi 0, %s24
      %s25 = sphi 0, %s22
      %s26 = sphi 0, %s25
      %s42 = sphi 0, %s26
      %s46 = sphi 0, %s46
      %s48 = sphi 0, %s46
      %s49 = sphi 0, %s48
      %s63 = sphi 0, %s49
      %s67 = sphi 0, %s67
      %s69 = sphi 0, %s67
      %s70 = sphi 0, %s69
      %s84 = sphi 0, %s70
      %s90 = sphi 0, %s92
      %s93 = sphi 0, %s90
      %s94 = sphi 0, %s93
      %s110 = sphi 0, %s94
    $region4: #{tpu_custom_call.1} parent=1 // loop_header_branch
      %15 = sbr.rel (%p13) target = $region8
    $region5: #{tpu_custom_call.1} parent=1 // loop_body
      %s17 = ssub.s32 %s12, 1
      %s18 = ssub.s32 %s12, 2
      %s19 = sadd.s32 %s12, 1
      %s20 = ssub.s32 %s12, %s19
      %p21 = scmp.eq.s32.totalorder %s20, 0
      %s23 = sadd.s32 %s22, 1
      %s24 = scalar_select %p21, %s22, %s23
      %p27 = pneg %p21
      %p28 = scmp.eq.s32.totalorder %s12, 1
      %p29 = por %p27, %p28
      %p30 = scmp.ne.s32.totalorder %s22, %s25
      %p31 = scmp.eq.s32.totalorder %s12, 0
      %p32 = por %p30, %p31
      %p33 = scmp.ne.s32.totalorder %s22, %s25
      %p34 = scmp.eq.s32.totalorder %s17, 1
      %p35 = por %p33, %p34
      %p36 = scmp.ne.s32.totalorder %s25, %s26
      %p37 = scmp.eq.s32.totalorder %s17, 0
      %p38 = por %p36, %p37
      %p39 = scmp.ne.s32.totalorder %s25, %s26
      %p40 = scmp.eq.s32.totalorder %s18, 1
      %p41 = por %p39, %p40
      %p43 = scmp.ne.s32.totalorder %s26, %s42
      %p44 = scmp.eq.s32.totalorder %s18, 0
      %p45 = por %p43, %p44
      %s47 = sadd.s32 %s46, 1
      %p50 = scmp.eq.s32.totalorder %s12, 1
      %p51 = scmp.ne.s32.totalorder %s46, %s48
      %p52 = scmp.eq.s32.totalorder %s12, 0
      %p53 = por %p51, %p52
      %p54 = scmp.ne.s32.totalorder %s46, %s48
      %p55 = scmp.eq.s32.totalorder %s17, 1
      %p56 = por %p54, %p55
      %p57 = scmp.ne.s32.totalorder %s48, %s49
      %p58 = scmp.eq.s32.totalorder %s17, 0
      %p59 = por %p57, %p58
      %p60 = scmp.ne.s32.totalorder %s48, %s49
      %p61 = scmp.eq.s32.totalorder %s18, 1
      %p62 = por %p60, %p61
      %p64 = scmp.ne.s32.totalorder %s49, %s63
      %p65 = scmp.eq.s32.totalorder %s18, 0
      %p66 = por %p64, %p65
      %s68 = sadd.s32 %s67, 1
      %p71 = scmp.eq.s32.totalorder %s12, 1
      %p72 = scmp.ne.s32.totalorder %s67, %s69
      %p73 = scmp.eq.s32.totalorder %s12, 0
      %p74 = por %p72, %p73
      %p75 = scmp.ne.s32.totalorder %s67, %s69
      %p76 = scmp.eq.s32.totalorder %s17, 1
      %p77 = por %p75, %p76
      %p78 = scmp.ne.s32.totalorder %s69, %s70
      %p79 = scmp.eq.s32.totalorder %s17, 0
      %p80 = por %p78, %p79
      %p81 = scmp.ne.s32.totalorder %s69, %s70
      %p82 = scmp.eq.s32.totalorder %s18, 1
      %p83 = por %p81, %p82
      %p85 = scmp.ne.s32.totalorder %s70, %s84
      %p86 = scmp.eq.s32.totalorder %s18, 0
      %p87 = por %p85, %p86
      %s88 = ssub.s32 %s12, %s19
      %p89 = scmp.eq.s32.totalorder %s88, 0
      %s91 = sadd.s32 %s90, 1
      %s92 = scalar_select %p89, %s90, %s91
      %p95 = pneg %p89
      %p96 = scmp.eq.s32.totalorder %s12, 1
      %p97 = por %p95, %p96
      %p98 = scmp.ne.s32.totalorder %s90, %s93
      %p99 = scmp.eq.s32.totalorder %s12, 0
      %p100 = por %p98, %p99
      %p101 = scmp.ne.s32.totalorder %s90, %s93
      %p102 = scmp.eq.s32.totalorder %s17, 1
      %p103 = por %p101, %p102
      %p104 = scmp.ne.s32.totalorder %s93, %s94
      %p105 = scmp.eq.s32.totalorder %s17, 0
      %p106 = por %p104, %p105
      %p107 = scmp.ne.s32.totalorder %s93, %s94
      %p108 = scmp.eq.s32.totalorder %s18, 1
      %p109 = por %p107, %p108
      %p111 = scmp.ne.s32.totalorder %s94, %s110
      %p112 = scmp.eq.s32.totalorder %s18, 0
      %p113 = por %p111, %p112
      %p114 = scmp.le.s32.totalorder 1, %s12
      %p115 = scmp.lt.s32.totalorder %s12, 3
      %p116 = pnand %p114, %p115
      %p117 = pneg %p116
      // Predicated region
      $region9: #{tpu_custom_call.1} parent=5 // pred_check
        _
      $region10: #{tpu_custom_call.1} parent=5 // pred_check_branch
        %119 = sbr.rel (%p116) target = $region12
      $region11: #{tpu_custom_call.1} parent=5 // pred_region
        %s120 = ssub.s32 %s12, 1
        // Predicated region
        $region13: #{tpu_custom_call.1} parent=11 // pred_check
          %p121 = pneg %p59
        $region14: #{tpu_custom_call.1} parent=11 // pred_check_branch
          %123 = sbr.rel (%p121) target = $region16
        $region15: #{tpu_custom_call.1} parent=11 // pred_region
          _
        $region16: #{tpu_custom_call.1} parent=11 // pred_fallthru
          _
        // Predicated region
        $region17: #{tpu_custom_call.1} parent=11 // pred_check
          %p124 = pneg %p80
        $region18: #{tpu_custom_call.1} parent=11 // pred_check_branch
          %126 = sbr.rel (%p124) target = $region20
        $region19: #{tpu_custom_call.1} parent=11 // pred_region
          _
        $region20: #{tpu_custom_call.1} parent=11 // pred_fallthru
          _
      $region12: #{tpu_custom_call.1} parent=5 // pred_fallthru
        _
      %p127 = scmp.lt.s32.totalorder %s12, 2
      // Predicated region
      $region21: #{tpu_custom_call.1} parent=5 // pred_check
        %p128 = pneg %p127
      $region22: #{tpu_custom_call.1} parent=5 // pred_check_branch
        %130 = sbr.rel (%p128) target = $region24
      $region23: #{tpu_custom_call.1} parent=5 // pred_region
        // Predicated region
        $region25: #{tpu_custom_call.1} parent=23 // pred_check
          %p131 = pneg %p32
        $region26: #{tpu_custom_call.1} parent=23 // pred_check_branch
          %133 = sbr.rel (%p131) target = $region28
        $region27: #{tpu_custom_call.1} parent=23 // pred_region
          %p134 = scmp.lt.s32.totalorder %s12, 1
          %s135 = scalar_select %p134, %s12, 1
          %s136 = smul.addr %s135, 2
          %s137 = smul.addr %s136, 8
          %s138 = scalar_lea.vmem %s0, %s137
        $region28: #{tpu_custom_call.1} parent=23 // pred_fallthru
          _
      $region24: #{tpu_custom_call.1} parent=5 // pred_fallthru
        _
      %p139 = scmp.le.s32.totalorder 1, %s12
      %p140 = scmp.lt.s32.totalorder %s12, 3
      %p141 = pnand %p139, %p140
      %p142 = pneg %p141
      // Predicated region
      $region29: #{tpu_custom_call.1} parent=5 // pred_check
        _
      $region30: #{tpu_custom_call.1} parent=5 // pred_check_branch
        %144 = sbr.rel (%p141) target = $region32
      $region31: #{tpu_custom_call.1} parent=5 // pred_region
        %s145 = ssub.s32 %s12, 1
        %p146 = scmp.lt.s32.totalorder %s17, 1
        %s147 = scalar_select %p146, %s17, 1
        %s148 = smul.addr %s147, 2
        %s149 = smul.addr %s148, 8
        %s150 = scalar_lea.vmem %s0, %s149
        %p151 = pneg %p38
        %p152 = pneg %p35
        %p153 = pneg %p59
        %p154 = pneg %p56
        %p155 = pneg %p80
        %p156 = pneg %p77
        %p157 = pneg %p106
        %p158 = pneg %p103
        %s159 = sand.u32 %s93, 1
        %s160 = scalar_lea.sflag [#allocation3], %s159
        %s161 = sand.u32 %s93, 1
        %s162 = smul.addr %s161, 16
        %s163 = scalar_lea.vmem [#allocation2], %s162
        %p164 = scmp.lt.s32.totalorder %s17, 1
        %s165 = scalar_select %p164, %s17, 1
        %s166 = smul.addr %s165, 2
        %s167 = smul.addr %s166, 8
        %s168 = scalar_lea.vmem %s0, %s167
        %v169 = vld [vmem:[%s168] sm:$0xff]
        %v170 = vld [vmem:[%s168 + $0x8] sm:$0xff]
        %v172 = vrot.slane %v170, 7
        %vm175 = vcmask 1040384
        %v176 = vrot.slane %v169, 7
        %v177 = vsel %vm175, %v176, %v172
        %v179 = vsel %vm175, %v172, %v176
        %vm180 = vcmask 1046528
        %v181 = vrot.slane %v169, 1
        %v182 = vrot.slane %v170, 1
        %v183 = vsel %vm180, %v181, %v182
        %v186 = vsel %vm180, %v182, %v181
        %v187 = vld [vmem:[%s1] sm:$0xf]
        %s188 = scalar_lea.vmem %s1, 4
        %v189 = vld [vmem:[%s188] sm:$0xf]
        %s190 = scalar_lea.vmem %s1, 8
        %v191 = vld [vmem:[%s190] sm:$0xf]
        %v192 = vld [vmem:[%s2] sm:$0xff]
        %v193 = vld [vmem:[%s2 + $0x8] sm:$0xff]
        %vm194 = vcmask 31744
        %v196 = vsel %vm194, %v179, 0
        %v198 = vsel %vm194, %v177, 0
        %vm200 = vcmask 1043456
        %v202 = vsel %vm200, %v187, 0
        %204 = vmatpush.msra.mxu0 0.0
        %205 = vmatpush.msra.mxu0 0.0
        %206 = vmatpush.msra.mxu0 0.0
        %207 = vmatpush.msra.mxu0 0.0
        %208 = vmatpush.msra.mxu0 0.0
        %209 = vmatpush.msra.mxu0 0.0
        %210 = vmatpush.msra.mxu0 0.0
        %211 = vmatpush.msra.mxu0 0.0
        %212 = vmatpush.msra.mxu0 0.0
        %213 = vmatpush.msra.mxu0 0.0
        %214 = vmatpush.msra.mxu0 0.0
        %215 = vmatpush.msra.mxu0 0.0
        %216 = vmatpush.msra.mxu0 0.0
        %217 = vmatpush.msra.mxu0 0.0
        %218 = vmatpush.msra.mxu0 0.0
        %219 = vmatpush.msra.mxu0 %v202
        %220 = vmatmul.f32.gmra.mxu0 %v196
        %v221 = vpop.f32.mrf.mxu0
        %v222 = vadd.f32 0.0, %v221
        %223 = vmatmul.f32.gmra.mxu0 %v198
        %v224 = vpop.f32.mrf.mxu0
        %v225 = vadd.f32 0.0, %v224
        %226 = vdwg.mxu0
        %v227 = vsel %vm194, %v169, 0
        %v229 = vsel %vm194, %v170, 0
        %v232 = vsel %vm200, %v189, 0
        %234 = vmatpush.msra.mxu0 0.0
        %235 = vmatpush.msra.mxu0 0.0
        %236 = vmatpush.msra.mxu0 0.0
        %237 = vmatpush.msra.mxu0 0.0
        %238 = vmatpush.msra.mxu0 0.0
        %239 = vmatpush.msra.mxu0 0.0
        %240 = vmatpush.msra.mxu0 0.0
        %241 = vmatpush.msra.mxu0 0.0
        %242 = vmatpush.msra.mxu0 0.0
        %243 = vmatpush.msra.mxu0 0.0
        %244 = vmatpush.msra.mxu0 0.0
        %245 = vmatpush.msra.mxu0 0.0
        %246 = vmatpush.msra.mxu0 0.0
        %247 = vmatpush.msra.mxu0 0.0
        %248 = vmatpush.msra.mxu0 0.0
        %249 = vmatpush.msra.mxu0 %v232
        %250 = vmatmul.f32.gmra.mxu0 %v227
        %v251 = vpop.f32.mrf.mxu0
        %v252 = vadd.f32 %v222, %v251
        %253 = vmatmul.f32.gmra.mxu0 %v229
        %v254 = vpop.f32.mrf.mxu0
        %v255 = vadd.f32 %v225, %v254
        %256 = vdwg.mxu0
        %v257 = vsel %vm194, %v183, 0
        %v260 = vsel %vm194, %v186, 0
        %v263 = vsel %vm200, %v191, 0
        %265 = vmatpush.msra.mxu0 0.0
        %266 = vmatpush.msra.mxu0 0.0
        %267 = vmatpush.msra.mxu0 0.0
        %268 = vmatpush.msra.mxu0 0.0
        %269 = vmatpush.msra.mxu0 0.0
        %270 = vmatpush.msra.mxu0 0.0
        %271 = vmatpush.msra.mxu0 0.0
        %272 = vmatpush.msra.mxu0 0.0
        %273 = vmatpush.msra.mxu0 0.0
        %274 = vmatpush.msra.mxu0 0.0
        %275 = vmatpush.msra.mxu0 0.0
        %276 = vmatpush.msra.mxu0 0.0
        %277 = vmatpush.msra.mxu0 0.0
        %278 = vmatpush.msra.mxu0 0.0
        %279 = vmatpush.msra.mxu0 0.0
        %280 = vmatpush.msra.mxu0 %v263
        %281 = vmatmul.f32.gmra.mxu0 %v257
        %v282 = vpop.f32.mrf.mxu0
        %v283 = vadd.f32 0.0, %v282
        %284 = vmatmul.f32.gmra.mxu0 %v260
        %v285 = vpop.f32.mrf.mxu0
        %v286 = vadd.f32 0.0, %v285
        %287 = vdwg.mxu0
        %v288 = vadd.f32 %v252, %v283
        %v289 = vadd.f32 %v255, %v286
        %v290 = vadd.f32 %v288, %v192
        %v291 = vadd.f32 %v289, %v193
        %292 = vst [vmem:[%s163] sm:$0xff] %v290
        %293 = vst [vmem:[%s163 + $0x8] sm:$0xff] %v291
        %s294 = sand.u32 %s93, 1
        %s295 = scalar_lea.sflag [#allocation3], %s294
        %s296 = sand.u32 %s93, 1
        %s297 = smul.addr %s296, 16
        %s298 = scalar_lea.vmem [#allocation2], %s297
        // Predicated region
        $region33: #{tpu_custom_call.1} parent=31 // pred_check
          %p299 = pneg %p103
        $region34: #{tpu_custom_call.1} parent=31 // pred_check_branch
          %301 = sbr.rel (%p299) target = $region36
        $region35: #{tpu_custom_call.1} parent=31 // pred_region
          %303 = vsyncadd %s295, 0
          %s304 = smul.addr %s17, 2
          %s305 = smul.addr %s304, 8
          %s306 = scalar_lea.hbm %s3, %s305
          %s307 = sshll.u32 %s298, 4
          %s308 = int_to_ptr.vmem [resolvable:$true] %s307
          %s309 = sshll.u32 %s306, 4
          %s310 = int_to_ptr.hbm [resolvable:$true] %s309
          %315 = dma.vmem_to_hbm [thread:$0]  %s308, 256, %s310, %s295, 128, 128, 8
        $region36: #{tpu_custom_call.1} parent=31 // pred_fallthru
          _
      $region32: #{tpu_custom_call.1} parent=5 // pred_fallthru
        _
      %p316 = scmp.le.s32.totalorder 2, %s12
      // Predicated region
      $region37: #{tpu_custom_call.1} parent=5 // pred_check
        %p317 = pneg %p316
      $region38: #{tpu_custom_call.1} parent=5 // pred_check_branch
        %319 = sbr.rel (%p317) target = $region40
      $region39: #{tpu_custom_call.1} parent=5 // pred_region
        %s320 = ssub.s32 %s12, 2
        // Predicated region
        $region41: #{tpu_custom_call.1} parent=39 // pred_check
          %p321 = pneg %p109
        $region42: #{tpu_custom_call.1} parent=39 // pred_check_branch
          %323 = sbr.rel (%p321) target = $region44
        $region43: #{tpu_custom_call.1} parent=39 // pred_region
          %s324 = sand.u32 %s94, 1
          %s325 = scalar_lea.sflag [#allocation3], %s324
          %s326 = sand.u32 %s94, 1
          %s327 = smul.addr %s326, 16
          %s328 = scalar_lea.vmem [#allocation2], %s327
          %330 = dma.done %s325, 256
        $region44: #{tpu_custom_call.1} parent=39 // pred_fallthru
          _
      $region40: #{tpu_custom_call.1} parent=5 // pred_fallthru
        _
    $region6: #{tpu_custom_call.1} parent=1 // loop_footer
      %s16 = sadd.s32 1, %s12
    $region7: #{tpu_custom_call.1} parent=1 // loop_footer_branch
      %11 = sbr.rel target = $region3
    $region8: #{tpu_custom_call.1} parent=1 // loop_exit
      _
    %331 = vsyncpa [#allocation3], 1
    %s332 = scalar_lea.sflag [#allocation3], 1
    %333 = vsyncpa %s332, 1

</llo_original>
